<compile_context>
chip_gen: v7x
topology: tpu7x:2x2x1
jax: 0.10.0
libtpu: 0.0.40
codegen_flags: <defaults>
</compile_context>

<pallas_src>
import functools

import jax
import jax.numpy as jnp
from jax.experimental import pallas as pl
from jax.experimental.pallas import tpu as pltpu


def _conv1x1_kernel(w_ref, b_ref, x_ref, o_ref, *, out_planes):
    # w_ref: (OUT, C)  VMEM (resident, index_map constant)
    # b_ref: (OUT,)    SMEM scalars
    # x_ref: (C, tHW)  VMEM  -- channels on sublanes, spatial on lanes (lane-dense)
    # o_ref: (OUT, tHW) VMEM -- lane-dense output
    acc = jnp.dot(w_ref[...], x_ref[...], preferred_element_type=jnp.float32)  # (OUT, tHW)
    if out_planes == 1:
        acc = acc + b_ref[0]
    else:
        # Small static OUT: build a per-row bias via unrolled selects (stays on the VPU).
        row = jax.lax.broadcasted_iota(jnp.int32, acc.shape, 0)
        bcast = jnp.zeros_like(acc)
        for o in range(out_planes):
            bcast = jnp.where(row == o, b_ref[o], bcast)
        acc = acc + bcast
    o_ref[...] = acc.astype(o_ref.dtype)


def predict_forward(x_nchw, weight, bias, *, max_tile=8192):
    """1x1 Conv2d forward (Predict module).

    x_nchw: (N, C, H, W) float32
    weight: (OUT, C, 1, 1) float32   (PyTorch Conv2d weight layout)
    bias:   (OUT,) float32
    returns (N, OUT, H, W) float32
    """
    N, C, H, W = x_nchw.shape
    OUT = weight.shape[0]
    HW = H * W

    # Free views: no transposes, no extra HBM passes over the activation.
    x = x_nchw.reshape(N, C, HW)
    w = weight.reshape(OUT, C)
    b = bias.reshape(OUT)

    # Spatial tile: multiple of 128 lanes, as large as useful, single step for small HW.
    lane = 128
    t_hw = min(max_tile, ((HW + lane - 1) // lane) * lane)
    hw_pad = ((HW + t_hw - 1) // t_hw) * t_hw
    if hw_pad != HW:
        x = jnp.pad(x, ((0, 0), (0, 0), (0, hw_pad - HW)))

    grid = (N, hw_pad // t_hw)  # batch axis + spatial tiles, both parallel (megacore-friendly)

    cost = pl.CostEstimate(
        flops=2 * N * HW * C * OUT,
        transcendentals=0,
        bytes_accessed=4 * (N * C * HW + OUT * C + OUT + N * OUT * HW),
    )

    kernel = functools.partial(_conv1x1_kernel, out_planes=OUT)

    out = pl.pallas_call(
        kernel,
        out_shape=jax.ShapeDtypeStruct((N, OUT, hw_pad), x_nchw.dtype),
        grid_spec=pltpu.PrefetchScalarGridSpec(
            num_scalar_prefetch=0,
            grid=grid,
            in_specs=[
                pl.BlockSpec((OUT, C), lambda n, j: (0, 0)),           # weight, resident
                pl.BlockSpec(memory_space=pltpu.MemorySpace.SMEM),     # bias scalars in SMEM
                pl.BlockSpec((None, C, t_hw), lambda n, j: (n, 0, j)), # x tile (C, tHW)
            ],
            out_specs=pl.BlockSpec((None, OUT, t_hw), lambda n, j: (n, 0, j)),
        ),
        compiler_params=pltpu.CompilerParams(
            dimension_semantics=("parallel", "parallel")),
        cost_estimate=cost,
    )(w, b, x)

    if hw_pad != HW:
        out = out[:, :, :HW]          # drop spatial padding (bias-only columns)
    return out.reshape(N, OUT, H, W)  # free view back to NCHW


if __name__ == "__main__":
    key = jax.random.PRNGKey(0)
    kx, kw, kb = jax.random.split(key, 3)

    N, C, H, W = 2, 32, 16, 16
    OUT = 1

    x = jax.random.normal(kx, (N, C, H, W), dtype=jnp.float32)
    # Deterministic parameter init (Conv2d weight (OUT, C, 1, 1), bias (OUT,))
    weight = jax.random.normal(kw, (OUT, C, 1, 1), dtype=jnp.float32) * 0.1
    bias = jax.random.normal(kb, (OUT,), dtype=jnp.float32) * 0.1

    y = predict_forward(x, weight, bias)
    y = jax.block_until_ready(y)

    # Sanity check against a pure-JAX reference (einsum form of 1x1 conv).
    y_ref = jnp.einsum("nchw,oc->nohw", x, weight.reshape(OUT, C)) + bias.reshape(1, OUT, 1, 1)
    assert y.shape == (N, OUT, H, W)
    assert jnp.allclose(y, y_ref, atol=1e-4, rtol=1e-4)

    print("KERNEL_OK")
</pallas_src>

<mosaic_0001>
module attributes {stable_mosaic.version = 11 : i64} {
  func.func @_conv1x1_kernel(%arg0: i32, %arg1: i32, %arg2: memref<1x32xf32, #tpu.memory_space<vmem>>, %arg3: memref<1xf32, #tpu.memory_space<smem>>, %arg4: memref<1x32x256xf32, #tpu.memory_space<vmem>>, %arg5: memref<1x1x256xf32, #tpu.memory_space<vmem>>) attributes {dimension_semantics = [#tpu.dimension_semantics<parallel>, #tpu.dimension_semantics<parallel>], iteration_bounds = array<i64: 2, 1>, scalar_prefetch = 0 : i64, scratch_operands = 0 : i64, tpu.core_type = #tpu.core_type<tc>, window_params = [{pipeline_mode = #tpu.pipeline_mode<synchronous>, transform_indices = @transform_0, window_bounds = array<i64: 1, 32>}, {transform_indices = @transform_1, window_bounds = array<i64: 1>}, {transform_indices = @transform_2, window_bounds = array<i64: 1, 32, 256>}, {transform_indices = @transform_3, window_bounds = array<i64: 1, 1, 256>}]} {
    %c0 = arith.constant 0 : index
    %c0_0 = arith.constant 0 : index
    %0 = vector.load %arg2[%c0, %c0_0] : memref<1x32xf32, #tpu.memory_space<vmem>>, vector<1x32xf32>
    %c0_1 = arith.constant 0 : index
    %c0_2 = arith.constant 0 : index
    %c0_3 = arith.constant 0 : index
    %1 = vector.load %arg4[%c0_1, %c0_2, %c0_3] : memref<1x32x256xf32, #tpu.memory_space<vmem>>, vector<1x32x256xf32>
    %2 = vector.shape_cast %1 : vector<1x32x256xf32> to vector<32x256xf32>
    %cst = arith.constant dense<0.000000e+00> : vector<1x256xf32>
    %3 = tpu.matmul %0, %2, %cst {dimension_numbers = #tpu.dot_dimension_numbers<[1], [0], [0], [1], [0, 0, 1, 1], [], []>} : vector<1x32xf32>, vector<32x256xf32>, vector<1x256xf32> -> vector<1x256xf32>
    %c0_4 = arith.constant 0 : index
    %4 = memref.load %arg3[%c0_4] : memref<1xf32, #tpu.memory_space<smem>>
    %5 = vector.broadcast %4 : f32 to vector<1x256xf32>
    %6 = arith.addf %3, %5 : vector<1x256xf32>
    %c0_5 = arith.constant 0 : index
    %c0_6 = arith.constant 0 : index
    %c0_7 = arith.constant 0 : index
    %7 = vector.load %arg5[%c0_5, %c0_6, %c0_7] : memref<1x1x256xf32, #tpu.memory_space<vmem>>, vector<1x1x256xf32>
    %8 = vector.shape_cast %7 : vector<1x1x256xf32> to vector<1x256xf32>
    %9 = vector.shape_cast %6 : vector<1x256xf32> to vector<1x1x256xf32>
    tpu.vector_store %arg5[%c0_5, %c0_6, %c0_7], %9 {strides = array<i32>} : memref<1x1x256xf32, #tpu.memory_space<vmem>>, vector<1x1x256xf32>,
    return
  }
  func.func @transform_0(%arg0: i32, %arg1: i32) -> (i32, i32) {
    %c0_i32 = arith.constant 0 : i32
    %c0_i32_0 = arith.constant 0 : i32
    %c0_i32_1 = arith.constant 0 : i32
    return %c0_i32, %c0_i32_0 : i32, i32
  }
  func.func @transform_1(%arg0: i32, %arg1: i32) -> i32 {
    %c0_i32 = arith.constant 0 : i32
    %c0_i32_0 = arith.constant 0 : i32
    return %c0_i32 : i32
  }
  func.func @transform_2(%arg0: i32, %arg1: i32) -> (i32, i32, i32) {
    %c0_i32 = arith.constant 0 : i32
    %c0_i32_0 = arith.constant 0 : i32
    return %arg0, %c0_i32, %arg1 : i32, i32, i32
  }
  func.func @transform_3(%arg0: i32, %arg1: i32) -> (i32, i32, i32) {
    %c0_i32 = arith.constant 0 : i32
    %c0_i32_0 = arith.constant 0 : i32
    return %arg0, %c0_i32, %arg1 : i32, i32, i32
  }
}

</mosaic_0001>

<llo_original>
// kernel: tpu_custom_call.1
$region0: #{tpu_custom_call.1}
  #allocation0 [shape = 'u32[]', space=smem, size = 0x4, offset = 0x4, fixed_abs, tag = 'smem constant byte address 0x4 - core index']
  #allocation1 [shape = 'u32[144,128]{1,0:T(1,128)}', space=vmem, size = 0x12000, scoped, tag = 'internal scratch']
  #allocation2 [shape = 'f32[1]{0:T(128)S(6)}', space=smem, size = 0x200, scoped, tag = 'scoped memory for tpu_custom_call.1']
  %s0 = inlined_call_operand.vmem [shape: f32[1,32], index: 0, kind: input, shape index: {}]
  %s1 = inlined_call_operand.<no memory space> [shape: f32[1], index: 1, kind: input, shape index: {}]
  %s2 = inlined_call_operand.hbm [shape: f32[2,32,256], index: 2, kind: input, shape index: {}]
  %s3 = inlined_call_operand.hbm [shape: f32[2,1,256], index: 3, kind: output, shape index: {}]
  %s4 = sld [smem:[#allocation0]]
  $region49: #{tpu_custom_call.1} parent=0
    _
  %s6 = ssub.s32 1, %s4
  %s7 = scalar_select 0, %s6, %s4
  %8 = sst [smem:[#allocation2]] %s1
  $region1: #{tpu_custom_call.1} parent=0
    #allocation3 [shape = 'u8[65536]{0}', space=vmem, size = 0x10000, scoped, tag = 'input window, operand 2']
    #allocation4 [shape = 's32[2]{0}', space=sflag, size = 0x8, scoped, tag = 'scoped memory for tpu_custom_call.1']
    #allocation5 [shape = 's32[2]{0}', space=sflag, size = 0x8, scoped, tag = 'scoped memory for tpu_custom_call.1']
    #allocation6 [shape = 'u8[2048]{0}', space=vmem, size = 0x800, scoped, tag = 'output window, operand 0']
    %9 = vsyncpa [#allocation4], 0
    %s10 = scalar_lea.sflag [#allocation4], 1
    %11 = vsyncpa %s10, 0
    %12 = vsyncpa [#allocation5], 0
    %s13 = scalar_lea.sflag [#allocation5], 1
    %14 = vsyncpa %s13, 0
    loop: start=0, step=1, limit=4
    $region2: #{tpu_custom_call.1} parent=1 // loop_pre_header
      _
    $region3: #{tpu_custom_call.1} parent=1 // loop_header
      %s16 = sphi 0, %s20
      %p17 = scmp.ge.s32.totalorder %s16, 4
      %s23 = sphi 0, %s35
      %s24 = sphi 0, %s31
      %s25 = sphi 0, %s23
      %s26 = sphi 0, %s24
      %s27 = sphi 0, %s25
      %s28 = sphi 0, %s26
      %s36 = sphi 0, %s36
      %s38 = sphi 0, %s36
      %s39 = sphi 0, %s38
      %s53 = sphi 0, %s39
      %s57 = sphi 0, %s57
      %s59 = sphi 0, %s57
      %s60 = sphi 0, %s59
      %s74 = sphi 0, %s60
      %s82 = sphi 0, %s84
      %s85 = sphi 0, %s82
      %s86 = sphi 0, %s85
      %s102 = sphi 0, %s86
      %s110 = sphi 0, %s112
      %s113 = sphi 0, %s110
      %s114 = sphi 0, %s113
      %s130 = sphi 0, %s114
    $region4: #{tpu_custom_call.1} parent=1 // loop_header_branch
      %19 = sbr.rel (%p17) target = $region8
    $region5: #{tpu_custom_call.1} parent=1 // loop_body
      %s21 = ssub.s32 %s16, 1
      %s22 = ssub.s32 %s16, 2
      %s29 = sadd.s32 1, %s24
      %p30 = scmp.ge.s32.totalorder %s29, 1
      %s31 = scalar_select %p30, 0, %s29
      %s32 = sadd.s32 1, %s23
      %s33 = scalar_select %p30, %s32, %s23
      %p34 = scmp.ge.s32.totalorder %s33, 2
      %s35 = scalar_select %p34, 0, %s33
      %s37 = sadd.s32 %s36, 1
      %p40 = scmp.eq.s32.totalorder %s16, 1
      %p41 = scmp.ne.s32.totalorder %s36, %s38
      %p42 = scmp.eq.s32.totalorder %s16, 0
      %p43 = por %p41, %p42
      %p44 = scmp.ne.s32.totalorder %s36, %s38
      %p45 = scmp.eq.s32.totalorder %s21, 1
      %p46 = por %p44, %p45
      %p47 = scmp.ne.s32.totalorder %s38, %s39
      %p48 = scmp.eq.s32.totalorder %s21, 0
      %p49 = por %p47, %p48
      %p50 = scmp.ne.s32.totalorder %s38, %s39
      %p51 = scmp.eq.s32.totalorder %s22, 1
      %p52 = por %p50, %p51
      %p54 = scmp.ne.s32.totalorder %s39, %s53
      %p55 = scmp.eq.s32.totalorder %s22, 0
      %p56 = por %p54, %p55
      %s58 = sadd.s32 %s57, 1
      %p61 = scmp.eq.s32.totalorder %s16, 1
      %p62 = scmp.ne.s32.totalorder %s57, %s59
      %p63 = scmp.eq.s32.totalorder %s16, 0
      %p64 = por %p62, %p63
      %p65 = scmp.ne.s32.totalorder %s57, %s59
      %p66 = scmp.eq.s32.totalorder %s21, 1
      %p67 = por %p65, %p66
      %p68 = scmp.ne.s32.totalorder %s59, %s60
      %p69 = scmp.eq.s32.totalorder %s21, 0
      %p70 = por %p68, %p69
      %p71 = scmp.ne.s32.totalorder %s59, %s60
      %p72 = scmp.eq.s32.totalorder %s22, 1
      %p73 = por %p71, %p72
      %p75 = scmp.ne.s32.totalorder %s60, %s74
      %p76 = scmp.eq.s32.totalorder %s22, 0
      %p77 = por %p75, %p76
      %s78 = ssub.s32 %s23, %s35
      %s79 = ssub.s32 %s24, %s31
      %s80 = sor.u32 %s78, %s79
      %p81 = scmp.eq.s32.totalorder %s80, 0
      %s83 = sadd.s32 %s82, 1
      %s84 = scalar_select %p81, %s82, %s83
      %p87 = pneg %p81
      %p88 = scmp.eq.s32.totalorder %s16, 1
      %p89 = por %p87, %p88
      %p90 = scmp.ne.s32.totalorder %s82, %s85
      %p91 = scmp.eq.s32.totalorder %s16, 0
      %p92 = por %p90, %p91
      %p93 = scmp.ne.s32.totalorder %s82, %s85
      %p94 = scmp.eq.s32.totalorder %s21, 1
      %p95 = por %p93, %p94
      %p96 = scmp.ne.s32.totalorder %s85, %s86
      %p97 = scmp.eq.s32.totalorder %s21, 0
      %p98 = por %p96, %p97
      %p99 = scmp.ne.s32.totalorder %s85, %s86
      %p100 = scmp.eq.s32.totalorder %s22, 1
      %p101 = por %p99, %p100
      %p103 = scmp.ne.s32.totalorder %s86, %s102
      %p104 = scmp.eq.s32.totalorder %s22, 0
      %p105 = por %p103, %p104
      %s106 = ssub.s32 %s23, %s35
      %s107 = ssub.s32 %s24, %s31
      %s108 = sor.u32 %s106, %s107
      %p109 = scmp.eq.s32.totalorder %s108, 0
      %s111 = sadd.s32 %s110, 1
      %s112 = scalar_select %p109, %s110, %s111
      %p115 = pneg %p109
      %p116 = scmp.eq.s32.totalorder %s16, 1
      %p117 = por %p115, %p116
      %p118 = scmp.ne.s32.totalorder %s110, %s113
      %p119 = scmp.eq.s32.totalorder %s16, 0
      %p120 = por %p118, %p119
      %p121 = scmp.ne.s32.totalorder %s110, %s113
      %p122 = scmp.eq.s32.totalorder %s21, 1
      %p123 = por %p121, %p122
      %p124 = scmp.ne.s32.totalorder %s113, %s114
      %p125 = scmp.eq.s32.totalorder %s21, 0
      %p126 = por %p124, %p125
      %p127 = scmp.ne.s32.totalorder %s113, %s114
      %p128 = scmp.eq.s32.totalorder %s22, 1
      %p129 = por %p127, %p128
      %p131 = scmp.ne.s32.totalorder %s114, %s130
      %p132 = scmp.eq.s32.totalorder %s22, 0
      %p133 = por %p131, %p132
      %p134 = scmp.le.s32.totalorder 1, %s16
      %p135 = scmp.lt.s32.totalorder %s16, 3
      %p136 = pnand %p134, %p135
      %p137 = pneg %p136
      // Predicated region
      $region9: #{tpu_custom_call.1} parent=5 // pred_check
        _
      $region10: #{tpu_custom_call.1} parent=5 // pred_check_branch
        %139 = sbr.rel (%p136) target = $region12
      $region11: #{tpu_custom_call.1} parent=5 // pred_region
        %s140 = ssub.s32 %s16, 1
        // Predicated region
        $region13: #{tpu_custom_call.1} parent=11 // pred_check
          %p141 = pneg %p49
        $region14: #{tpu_custom_call.1} parent=11 // pred_check_branch
          %143 = sbr.rel (%p141) target = $region16
        $region15: #{tpu_custom_call.1} parent=11 // pred_region
          _
        $region16: #{tpu_custom_call.1} parent=11 // pred_fallthru
          _
        // Predicated region
        $region17: #{tpu_custom_call.1} parent=11 // pred_check
          %p144 = pneg %p70
        $region18: #{tpu_custom_call.1} parent=11 // pred_check_branch
          %146 = sbr.rel (%p144) target = $region20
        $region19: #{tpu_custom_call.1} parent=11 // pred_region
          _
        $region20: #{tpu_custom_call.1} parent=11 // pred_fallthru
          _
      $region12: #{tpu_custom_call.1} parent=5 // pred_fallthru
        _
      %p147 = scmp.lt.s32.totalorder %s16, 2
      // Predicated region
      $region21: #{tpu_custom_call.1} parent=5 // pred_check
        %p148 = pneg %p147
      $region22: #{tpu_custom_call.1} parent=5 // pred_check_branch
        %150 = sbr.rel (%p148) target = $region24
      $region23: #{tpu_custom_call.1} parent=5 // pred_region
        // Predicated region
        $region25: #{tpu_custom_call.1} parent=23 // pred_check
          %p151 = pneg %p92
        $region26: #{tpu_custom_call.1} parent=23 // pred_check_branch
          %153 = sbr.rel (%p151) target = $region28
        $region27: #{tpu_custom_call.1} parent=23 // pred_region
          %s154 = sand.u32 %s82, 1
          %s155 = scalar_lea.sflag [#allocation4], %s154
          %s156 = sand.u32 %s82, 1
          %s157 = smul.addr %s156, 64
          %s158 = scalar_lea.vmem [#allocation3], %s157
          %s159 = smul.u32 2, %s24
          %s161 = ssub.s32 1024, 1024
          %162 = vsyncadd %s155, %s161
          %s163 = smul.addr %s23, 8
          %s164 = sadd.s32 %s159, %s163
          %s165 = smul.addr %s164, 128
          %s166 = scalar_lea.hbm %s2, %s165
          %s167 = sshll.u32 %s158, 4
          %s168 = int_to_ptr.vmem [resolvable:$true] %s167
          %173 = dma.hbm_to_vmem [thread:$0]  %s166, 1024, %s168, %s155, 256, 256, 16
        $region28: #{tpu_custom_call.1} parent=23 // pred_fallthru
          _
      $region24: #{tpu_custom_call.1} parent=5 // pred_fallthru
        _
      %p174 = scmp.le.s32.totalorder 1, %s16
      %p175 = scmp.lt.s32.totalorder %s16, 3
      %p176 = pnand %p174, %p175
      %p177 = pneg %p176
      // Predicated region
      $region29: #{tpu_custom_call.1} parent=5 // pred_check
        _
      $region30: #{tpu_custom_call.1} parent=5 // pred_check_branch
        %179 = sbr.rel (%p176) target = $region32
      $region31: #{tpu_custom_call.1} parent=5 // pred_region
        %s180 = ssub.s32 %s16, 1
        %s181 = sand.u32 %s85, 1
        %s182 = scalar_lea.sflag [#allocation4], %s181
        %s183 = sand.u32 %s85, 1
        %s184 = smul.addr %s183, 64
        %s185 = scalar_lea.vmem [#allocation3], %s184
        // Predicated region
        $region33: #{tpu_custom_call.1} parent=31 // pred_check
          %p186 = pneg %p98
        $region34: #{tpu_custom_call.1} parent=31 // pred_check_branch
          %188 = sbr.rel (%p186) target = $region36
        $region35: #{tpu_custom_call.1} parent=31 // pred_region
          %189 = dma.done %s182, 1024
        $region36: #{tpu_custom_call.1} parent=31 // pred_fallthru
          _
        %p190 = pneg %p49
        %p191 = pneg %p46
        %p192 = pneg %p70
        %p193 = pneg %p67
        %s194 = sand.u32 %s85, 1
        %s195 = scalar_lea.sflag [#allocation4], %s194
        %s196 = sand.u32 %s85, 1
        %s197 = smul.addr %s196, 64
        %s198 = scalar_lea.vmem [#allocation3], %s197
        %p199 = pneg %p98
        %p200 = pneg %p95
        %p201 = pneg %p126
        %p202 = pneg %p123
        %s203 = sand.u32 %s113, 1
        %s204 = scalar_lea.sflag [#allocation5], %s203
        %s205 = sand.u32 %s113, 1
        %s206 = smul.addr %s205, 2
        %s207 = scalar_lea.vmem [#allocation6], %s206
        %s208 = smul.u32 2, %s26
        %s209 = smul.u32 2, %s26
        %v210 = vld [vmem:[%s0] sm:$0x1]
        %v211 = vld [vmem:[%s185] sm:$0xff]
        %v212 = vld [vmem:[%s185 + $0x8] sm:$0xff]
        %v213 = vld [vmem:[%s185 + $0x10] sm:$0xff]
        %v214 = vld [vmem:[%s185 + $0x18] sm:$0xff]
        %v215 = vld [vmem:[%s185 + $0x20] sm:$0xff]
        %v216 = vld [vmem:[%s185 + $0x28] sm:$0xff]
        %v217 = vld [vmem:[%s185 + $0x30] sm:$0xff]
        %v218 = vld [vmem:[%s185 + $0x38] sm:$0xff]
        %s219 = sld [smem:[#allocation2]]
        %v220 = vstv %s219
        %vm221 = vcmask 261120
        %v223 = vsel %vm221, %v210, 0
        %225 = vmatprep.subr.mxu0 %v212
        %226 = vmatpush1.msra.mxu0 %v211
        %227 = vmatprep.subr.mxu0 %v214
        %228 = vmatpush1.msra.mxu0 %v213
        %229 = vmatprep.subr.mxu0 %v216
        %230 = vmatpush1.msra.mxu0 %v215
        %231 = vmatprep.subr.mxu0 %v218
        %232 = vmatpush1.msra.mxu0 %v217
        %233 = vmatprep.subr.mxu0 0.0
        %234 = vmatpush1.msra.mxu0 0.0
        %235 = vmatprep.subr.mxu0 0.0
        %236 = vmatpush1.msra.mxu0 0.0
        %237 = vmatprep.subr.mxu0 0.0
        %238 = vmatpush1.msra.mxu0 0.0
        %239 = vmatprep.subr.mxu0 0.0
        %240 = vmatpush1.msra.mxu0 0.0
        %241 = vmatprep.subr.mxu0 0.0
        %242 = vmatpush1.msra.mxu0 0.0
        %243 = vmatprep.subr.mxu0 0.0
        %244 = vmatpush1.msra.mxu0 0.0
        %245 = vmatprep.subr.mxu0 0.0
        %246 = vmatpush1.msra.mxu0 0.0
        %247 = vmatprep.subr.mxu0 0.0
        %248 = vmatpush1.msra.mxu0 0.0
        %249 = vmatprep.subr.mxu0 0.0
        %250 = vmatpush1.msra.mxu0 0.0
        %251 = vmatprep.subr.mxu0 0.0
        %252 = vmatpush1.msra.mxu0 0.0
        %253 = vmatprep.subr.mxu0 0.0
        %254 = vmatpush1.msra.mxu0 0.0
        %255 = vmatprep.subr.mxu0 0.0
        %256 = vmatpush1.msra.mxu0 0.0
        %257 = vmatprep.subr.mxu0 0.0
        %258 = vmatpush1.msra.mxu0 0.0
        %259 = vmatprep.subr.mxu0 0.0
        %260 = vmatpush1.msra.mxu0 0.0
        %261 = vmatprep.subr.mxu0 0.0
        %262 = vmatpush1.msra.mxu0 0.0
        %263 = vmatprep.subr.mxu0 0.0
        %264 = vmatpush1.msra.mxu0 0.0
        %265 = vmatprep.subr.mxu0 0.0
        %266 = vmatpush1.msra.mxu0 0.0
        %267 = vmatprep.subr.mxu0 0.0
        %268 = vmatpush1.msra.mxu0 0.0
        %269 = vmatprep.subr.mxu0 0.0
        %270 = vmatpush1.msra.mxu0 0.0
        %271 = vmatprep.subr.mxu0 0.0
        %272 = vmatpush1.msra.mxu0 0.0
        %273 = vmatprep.subr.mxu0 0.0
        %274 = vmatpush1.msra.mxu0 0.0
        %275 = vmatprep.subr.mxu0 0.0
        %276 = vmatpush1.msra.mxu0 0.0
        %277 = vmatprep.subr.mxu0 0.0
        %278 = vmatpush1.msra.mxu0 0.0
        %279 = vmatprep.subr.mxu0 0.0
        %280 = vmatpush1.msra.mxu0 0.0
        %281 = vmatprep.subr.mxu0 0.0
        %282 = vmatpush1.msra.mxu0 0.0
        %283 = vmatprep.subr.mxu0 0.0
        %284 = vmatpush1.msra.mxu0 0.0
        %285 = vmatprep.subr.mxu0 0.0
        %286 = vmatpush1.msra.mxu0 0.0
        %287 = vmatprep.subr.mxu0 0.0
        %288 = vmatpush1.msra.mxu0 0.0
        %289 = vmatprep.mubr.f32.mxu0 0.0
        %290 = vmatmul.mubr.f32.gmra.mrb[0].mxu0 %v223
        %v291 = vpop.f32.mrb[0].mxu0
        %v292 = vadd.f32 %v220, %v291
        %v293 = vpop.f32.mrb[0].mxu0
        %v294 = vadd.f32 %v220, %v293
        %295 = vdwg.mxu0
        %v298 = vcombine.low %v292, %v294
        %v300 = vunpack.c.l.s4 1966171168
        %v301 = vunpack.c.0.s8 %v300
        %v302 = vlaneseq
        %v303 = vshrl.u32 %v302, 7
        %v304 = vsub.s32 %v301, %v303
        %v305 = vrot.slane %v298, %v304
        %v307 = vunpack.c.l.s4 1966171168
        %v308 = vunpack.c.0.s8 %v307
        %v309 = vlaneseq
        %v310 = vshrl.u32 %v309, 7
        %v311 = vsub.s32 %v308, %v310
        %v312 = vrot.slane %v305, %v311
        %v314 = vlaneseq
        %vm315 = vcmp.ge.s32.totalorder %v314, 0
        %vm316 = vcmp.lt.s32.totalorder %v314, 256
        %vm317 = vmand %vm315, %vm316
        %318 = vst.msk [vmem:[%s207] sm:$0x3] %vm317, %v312
        %s319 = sand.u32 %s113, 1
        %s320 = scalar_lea.sflag [#allocation5], %s319
        %s321 = sand.u32 %s113, 1
        %s322 = smul.addr %s321, 2
        %s323 = scalar_lea.vmem [#allocation6], %s322
        // Predicated region
        $region37: #{tpu_custom_call.1} parent=31 // pred_check
          %p324 = pneg %p123
        $region38: #{tpu_custom_call.1} parent=31 // pred_check_branch
          %326 = sbr.rel (%p324) target = $region40
        $region39: #{tpu_custom_call.1} parent=31 // pred_region
          %s327 = smul.u32 2, %s26
          %s329 = ssub.s32 32, 32
          %330 = vsyncadd %s320, %s329
          %s331 = smul.addr %s25, 2
          %s332 = sadd.s32 %s327, %s331
          %s333 = smul.addr %s332, 16
          %s334 = scalar_lea.hbm %s3, %s333
          %s336 = sshll.u32 %s323, 4
          %s337 = int_to_ptr.vmem [resolvable:$true] %s336
          %339 = dma.vmem_to_hbm [thread:$0]  %s337, 32, %s334, %s320
        $region40: #{tpu_custom_call.1} parent=31 // pred_fallthru
          _
      $region32: #{tpu_custom_call.1} parent=5 // pred_fallthru
        _
      %p340 = scmp.le.s32.totalorder 2, %s16
      // Predicated region
      $region41: #{tpu_custom_call.1} parent=5 // pred_check
        %p341 = pneg %p340
      $region42: #{tpu_custom_call.1} parent=5 // pred_check_branch
        %343 = sbr.rel (%p341) target = $region44
      $region43: #{tpu_custom_call.1} parent=5 // pred_region
        %s344 = ssub.s32 %s16, 2
        // Predicated region
        $region45: #{tpu_custom_call.1} parent=43 // pred_check
          %p345 = pneg %p129
        $region46: #{tpu_custom_call.1} parent=43 // pred_check_branch
          %347 = sbr.rel (%p345) target = $region48
        $region47: #{tpu_custom_call.1} parent=43 // pred_region
          %s348 = sand.u32 %s114, 1
          %s349 = scalar_lea.sflag [#allocation5], %s348
          %s350 = sand.u32 %s114, 1
          %s351 = smul.addr %s350, 2
          %s352 = scalar_lea.vmem [#allocation6], %s351
          %353 = dma.done %s349, 32
        $region48: #{tpu_custom_call.1} parent=43 // pred_fallthru
          _
      $region44: #{tpu_custom_call.1} parent=5 // pred_fallthru
        _
    $region6: #{tpu_custom_call.1} parent=1 // loop_footer
      %s20 = sadd.s32 1, %s16
    $region7: #{tpu_custom_call.1} parent=1 // loop_footer_branch
      %15 = sbr.rel target = $region3
    $region8: #{tpu_custom_call.1} parent=1 // loop_exit
      _
    %354 = vsyncpa [#allocation4], 1
    %s355 = scalar_lea.sflag [#allocation4], 1
    %356 = vsyncpa %s355, 1
    %357 = vsyncpa [#allocation5], 1
    %s358 = scalar_lea.sflag [#allocation5], 1
    %359 = vsyncpa %s358, 1

</llo_original>
